<compile_context>
chip_gen: v7x
topology: tpu7x:2x2x1
jax: 0.10.0
libtpu: 0.0.40
codegen_flags: <defaults>
</compile_context>

<pallas_src>
import functools

import jax
import jax.numpy as jnp
from jax.experimental import pallas as pl
from jax.experimental.pallas import tpu as pltpu


def _round_up(x, m):
    return ((x + m - 1) // m) * m


def _cbow_kernel(idx_ref, emb_ref, wt_ref, out_ref, acc_ref, *,
                 num_context, tile_b):
    # idx_ref : SMEM (B_pad, C) int32   (scalar-prefetched token ids)
    # emb_ref : VMEM (V, E) f32         (embedding table, resident)
    # wt_ref  : VMEM (E, V) f32         (linear weight, pre-transposed RHS)
    # out_ref : VMEM (TB, V) f32        (one batch tile of the output)
    # acc_ref : VMEM (TB, E) f32        (sublane-dense gather accumulator)
    bt = pl.program_id(0)
    base = bt * tile_b
    emb_dim = acc_ref.shape[1]

    def gather_row(r, carry):
        # Sum the C context-token embedding rows for batch row (base + r),
        # then write the sum into its own sublane of the accumulator.
        def add_ctx(c, s):
            tok = idx_ref[base + r, c]
            return s + emb_ref[pl.ds(tok, 1), :]

        row_sum = jax.lax.fori_loop(
            0, num_context, add_ctx,
            jnp.zeros((1, emb_dim), jnp.float32), unroll=True)
        acc_ref[pl.ds(r, 1), :] = row_sum
        return carry

    jax.lax.fori_loop(0, tile_b, gather_row, 0)

    h = acc_ref[...] * (1.0 / num_context)          # mean over context, (TB, E)
    # (TB, E) @ (E, V) on the MXU; RHS already K-major, output lane-dense.
    out_ref[...] = jnp.dot(
        h, wt_ref[...], preferred_element_type=jnp.float32).astype(out_ref.dtype)


def cbow_forward(indices, emb_table, linear_w, *, tile_b=128):
    """indices: (B, C) int32; emb_table: (V, E) f32; linear_w: (V, E) f32."""
    B, C = indices.shape
    V, E = emb_table.shape
    assert linear_w.shape == (V, E)

    # Batch tile: at least 8 (sublane-dense), at most tile_b (default 128).
    tb = min(tile_b, _round_up(B, 8))
    b_pad = _round_up(B, tb)
    if b_pad != B:
        # Pad with token id 0 (valid row); padded outputs are sliced off below.
        indices = jnp.pad(indices, ((0, b_pad - B), (0, 0)))

    # One-time XLA transpose outside the kernel: K-major RHS for the MXU.
    w_t = linear_w.T                                  # (E, V)

    kernel = functools.partial(_cbow_kernel, num_context=C, tile_b=tb)

    grid_spec = pltpu.PrefetchScalarGridSpec(
        num_scalar_prefetch=1,
        grid=(b_pad // tb,),
        in_specs=[
            pl.BlockSpec((V, E), lambda bt, idx: (0, 0)),   # embedding table
            pl.BlockSpec((E, V), lambda bt, idx: (0, 0)),   # linear weight (E, V)
        ],
        out_specs=pl.BlockSpec((tb, V), lambda bt, idx: (bt, 0)),
        scratch_shapes=[pltpu.VMEM((tb, E), jnp.float32)],
    )

    cost = pl.CostEstimate(
        flops=2 * b_pad * E * V,
        transcendentals=0,
        bytes_accessed=4 * (2 * V * E + b_pad * V) + 4 * b_pad * C,
    )

    out = pl.pallas_call(
        kernel,
        out_shape=jax.ShapeDtypeStruct((b_pad, V), jnp.float32),
        grid_spec=grid_spec,
        compiler_params=pltpu.CompilerParams(
            dimension_semantics=("parallel",)),   # batch tiles are independent
        cost_estimate=cost,
    )(indices, emb_table, w_t)

    return out[:B]


def cbow_reference(indices, emb_table, linear_w):
    h = emb_table[indices]          # (B, C, E)
    h = h.mean(axis=1)              # (B, E)
    return h @ linear_w.T           # (B, V)


if __name__ == "__main__":
    # Small, deterministic synthetic setup (no checkpoints).
    V_size = 256   # vocabulary size
    E_size = 128   # embedding size
    B = 20         # batch (not a multiple of 8 -> exercises padding path)
    C = 6          # context window length (2 * window)

    key = jax.random.PRNGKey(0)
    k_emb, k_lin, k_idx = jax.random.split(key, 3)

    # nn.Embedding default init: N(0, 1)
    emb_table = jax.random.normal(k_emb, (V_size, E_size), dtype=jnp.float32)
    # nn.Linear default init: U(-1/sqrt(E), 1/sqrt(E)), bias=False
    bound = 1.0 / jnp.sqrt(E_size)
    linear_w = jax.random.uniform(
        k_lin, (V_size, E_size), dtype=jnp.float32, minval=-bound, maxval=bound)

    indices = jax.random.randint(k_idx, (B, C), 0, V_size, dtype=jnp.int32)

    out = cbow_forward(indices, emb_table, linear_w)
    out = jax.block_until_ready(out)

    ref = cbow_reference(indices, emb_table, linear_w)
    assert out.shape == (B, V_size), out.shape
    assert jnp.allclose(out, ref, atol=1e-3, rtol=1e-3), "mismatch vs reference"

    print("KERNEL_OK")
</pallas_src>

<mosaic_0001>
module attributes {stable_mosaic.version = 11 : i64} {
  func.func @_cbow_kernel(%arg0: i32, %arg1: memref<24x6xi32, #tpu.memory_space<smem>>, %arg2: memref<256x128xf32, #tpu.memory_space<vmem>>, %arg3: memref<128x256xf32, #tpu.memory_space<vmem>>, %arg4: memref<24x256xf32, #tpu.memory_space<vmem>>, %arg5: memref<24x128xf32, #tpu.memory_space<vmem>>) attributes {dimension_semantics = [#tpu.dimension_semantics<parallel>], iteration_bounds = array<i64: 1>, scalar_prefetch = 1 : i64, scratch_operands = 1 : i64, tpu.core_type = #tpu.core_type<tc>, window_params = [{pipeline_mode = #tpu.pipeline_mode<synchronous>, transform_indices = @transform_0, window_bounds = array<i64: 256, 128>}, {pipeline_mode = #tpu.pipeline_mode<synchronous>, transform_indices = @transform_1, window_bounds = array<i64: 128, 256>}, {transform_indices = @transform_2, window_bounds = array<i64: 24, 256>}]} {
    %c24_i32 = arith.constant 24 : i32
    %0 = arith.muli %arg0, %c24_i32 : i32
    %c0_i32 = arith.constant 0 : i32
    %c24_i32_0 = arith.constant 24 : i32
    %1 = arith.addi %c0_i32, %c24_i32_0 : i32
    %c1_i32 = arith.constant 1 : i32
    scf.for %arg6 = %c0_i32 to %1 step %c1_i32  : i32 {
      %cst_8 = arith.constant 0.000000e+00 : f32
      %8 = vector.broadcast %cst_8 : f32 to vector<1x128xf32>
      %c0_i32_9 = arith.constant 0 : i32
      %9 = arith.addi %0, %arg6 : i32
      %10 = arith.index_cast %9 : i32 to index
      %11 = arith.index_cast %c0_i32_9 : i32 to index
      %12 = memref.load %arg1[%10, %11] : memref<24x6xi32, #tpu.memory_space<smem>>
      %13 = arith.index_cast %12 : i32 to index
      %c0_10 = arith.constant 0 : index
      %14 = vector.load %arg2[%13, %c0_10] : memref<256x128xf32, #tpu.memory_space<vmem>>, vector<1x128xf32>
      %15 = arith.addf %8, %14 : vector<1x128xf32>
      %c1_i32_11 = arith.constant 1 : i32
      %16 = arith.addi %0, %arg6 : i32
      %17 = arith.index_cast %16 : i32 to index
      %18 = arith.index_cast %c1_i32_11 : i32 to index
      %19 = memref.load %arg1[%17, %18] : memref<24x6xi32, #tpu.memory_space<smem>>
      %20 = arith.index_cast %19 : i32 to index
      %c0_12 = arith.constant 0 : index
      %21 = vector.load %arg2[%20, %c0_12] : memref<256x128xf32, #tpu.memory_space<vmem>>, vector<1x128xf32>
      %22 = arith.addf %15, %21 : vector<1x128xf32>
      %c2_i32 = arith.constant 2 : i32
      %23 = arith.addi %0, %arg6 : i32
      %24 = arith.index_cast %23 : i32 to index
      %25 = arith.index_cast %c2_i32 : i32 to index
      %26 = memref.load %arg1[%24, %25] : memref<24x6xi32, #tpu.memory_space<smem>>
      %27 = arith.index_cast %26 : i32 to index
      %c0_13 = arith.constant 0 : index
      %28 = vector.load %arg2[%27, %c0_13] : memref<256x128xf32, #tpu.memory_space<vmem>>, vector<1x128xf32>
      %29 = arith.addf %22, %28 : vector<1x128xf32>
      %c3_i32 = arith.constant 3 : i32
      %30 = arith.addi %0, %arg6 : i32
      %31 = arith.index_cast %30 : i32 to index
      %32 = arith.index_cast %c3_i32 : i32 to index
      %33 = memref.load %arg1[%31, %32] : memref<24x6xi32, #tpu.memory_space<smem>>
      %34 = arith.index_cast %33 : i32 to index
      %c0_14 = arith.constant 0 : index
      %35 = vector.load %arg2[%34, %c0_14] : memref<256x128xf32, #tpu.memory_space<vmem>>, vector<1x128xf32>
      %36 = arith.addf %29, %35 : vector<1x128xf32>
      %c4_i32 = arith.constant 4 : i32
      %37 = arith.addi %0, %arg6 : i32
      %38 = arith.index_cast %37 : i32 to index
      %39 = arith.index_cast %c4_i32 : i32 to index
      %40 = memref.load %arg1[%38, %39] : memref<24x6xi32, #tpu.memory_space<smem>>
      %41 = arith.index_cast %40 : i32 to index
      %c0_15 = arith.constant 0 : index
      %42 = vector.load %arg2[%41, %c0_15] : memref<256x128xf32, #tpu.memory_space<vmem>>, vector<1x128xf32>
      %43 = arith.addf %36, %42 : vector<1x128xf32>
      %c5_i32 = arith.constant 5 : i32
      %44 = arith.addi %0, %arg6 : i32
      %45 = arith.index_cast %44 : i32 to index
      %46 = arith.index_cast %c5_i32 : i32 to index
      %47 = memref.load %arg1[%45, %46] : memref<24x6xi32, #tpu.memory_space<smem>>
      %48 = arith.index_cast %47 : i32 to index
      %c0_16 = arith.constant 0 : index
      %49 = vector.load %arg2[%48, %c0_16] : memref<256x128xf32, #tpu.memory_space<vmem>>, vector<1x128xf32>
      %50 = arith.addf %43, %49 : vector<1x128xf32>
      %c6_i32 = arith.constant 6 : i32
      %51 = arith.index_cast %arg6 : i32 to index
      %c0_17 = arith.constant 0 : index
      %52 = vector.load %arg5[%51, %c0_17] : memref<24x128xf32, #tpu.memory_space<vmem>>, vector<1x128xf32>
      tpu.vector_store %arg5[%51, %c0_17], %50 {strides = array<i32>} : memref<24x128xf32, #tpu.memory_space<vmem>>, vector<1x128xf32>,
    }
    %c24_i32_1 = arith.constant 24 : i32
    %c0 = arith.constant 0 : index
    %c0_2 = arith.constant 0 : index
    %2 = vector.load %arg5[%c0, %c0_2] : memref<24x128xf32, #tpu.memory_space<vmem>>, vector<24x128xf32>
    %cst = arith.constant 0.166666672 : f32
    %3 = vector.broadcast %cst : f32 to vector<24x128xf32>
    %4 = arith.mulf %2, %3 : vector<24x128xf32>
    %c0_3 = arith.constant 0 : index
    %c0_4 = arith.constant 0 : index
    %5 = vector.load %arg3[%c0_3, %c0_4] : memref<128x256xf32, #tpu.memory_space<vmem>>, vector<128x256xf32>
    %cst_5 = arith.constant dense<0.000000e+00> : vector<24x256xf32>
    %6 = tpu.matmul %4, %5, %cst_5 {dimension_numbers = #tpu.dot_dimension_numbers<[1], [0], [0], [1], [0, 0, 1, 1], [], []>} : vector<24x128xf32>, vector<128x256xf32>, vector<24x256xf32> -> vector<24x256xf32>
    %c0_6 = arith.constant 0 : index
    %c0_7 = arith.constant 0 : index
    %7 = vector.load %arg4[%c0_6, %c0_7] : memref<24x256xf32, #tpu.memory_space<vmem>>, vector<24x256xf32>
    tpu.vector_store %arg4[%c0_6, %c0_7], %6 {strides = array<i32>} : memref<24x256xf32, #tpu.memory_space<vmem>>, vector<24x256xf32>,
    return
  }
  func.func @transform_0(%arg0: i32, %arg1: memref<24x6xi32, #tpu.memory_space<smem>>) -> (i32, i32) {
    %c0_i32 = arith.constant 0 : i32
    %c0_i32_0 = arith.constant 0 : i32
    %c0_i32_1 = arith.constant 0 : i32
    return %c0_i32, %c0_i32_0 : i32, i32
  }
  func.func @transform_1(%arg0: i32, %arg1: memref<24x6xi32, #tpu.memory_space<smem>>) -> (i32, i32) {
    %c0_i32 = arith.constant 0 : i32
    %c0_i32_0 = arith.constant 0 : i32
    %c0_i32_1 = arith.constant 0 : i32
    return %c0_i32, %c0_i32_0 : i32, i32
  }
  func.func @transform_2(%arg0: i32, %arg1: memref<24x6xi32, #tpu.memory_space<smem>>) -> (i32, i32) {
    %c0_i32 = arith.constant 0 : i32
    %c0_i32_0 = arith.constant 0 : i32
    return %arg0, %c0_i32 : i32, i32
  }
}

</mosaic_0001>

<llo_original>
// kernel: tpu_custom_call.1
$region0: #{tpu_custom_call.1}
  #allocation0 [shape = 'u32[]', space=smem, size = 0x4, offset = 0x4, fixed_abs, tag = 'smem constant byte address 0x4 - core index']
  #allocation1 [shape = 'u32[144,128]{1,0:T(1,128)}', space=vmem, size = 0x12000, scoped, tag = 'internal scratch']
  #allocation2 [shape = 'f32[24,128]{1,0:T(8,128)}', space=vmem, size = 0x3000, scoped, tag = 'scratch operand']
  #allocation3 [shape = 's32[1]{0}', space=sflag, size = 0x4, scoped, tag = 'scoped memory for tpu_custom_call.1']
  #allocation4 [shape = 'u8[12288]{0}', space=smem, size = 0x3000, scoped, tag = 'prefetched SMEM operand 0']
  %s0 = inlined_call_operand.vmem [shape: s32[24,6], index: 0, kind: input, shape index: {}]
  %s1 = inlined_call_operand.hbm [shape: f32[256,128], index: 1, kind: input, shape index: {}]
  %s2 = inlined_call_operand.hbm [shape: f32[128,256], index: 2, kind: input, shape index: {}]
  %s3 = inlined_call_operand.hbm [shape: f32[24,256], index: 3, kind: output, shape index: {}]
  %s4 = sld [smem:[#allocation0]]
  $region33: #{tpu_custom_call.1} parent=0
    _
  %s6 = ssub.s32 1, %s4
  %s7 = scalar_select 0, %s6, %s4
  %s8 = sshll.u32 %s0, 4
  %s9 = int_to_ptr.vmem [resolvable:$true] %s8
  %11 = dma.vmem_to_smem %s9, 384, [#allocation4], [#allocation3]
  %12 = dma.done [#allocation3], 384
  %13 = sfence
  $region1: #{tpu_custom_call.1} parent=0
    #allocation5 [shape = 'u8[131072]{0}', space=vmem, size = 0x20000, scoped, tag = 'input window, operand 1, single buffered']
    #allocation6 [shape = 's32[1]{0}', space=sflag, size = 0x4, scoped, tag = 'scoped memory for tpu_custom_call.1']
    #allocation7 [shape = 's32[1]{0}', space=sflag, size = 0x4, scoped, tag = 'scoped memory for tpu_custom_call.1']
    #allocation8 [shape = 'u8[131072]{0}', space=vmem, size = 0x20000, scoped, tag = 'input window, operand 2, single buffered']
    #allocation9 [shape = 's32[1]{0}', space=sflag, size = 0x4, scoped, tag = 'scoped memory for tpu_custom_call.1']
    #allocation10 [shape = 'u8[24576]{0}', space=vmem, size = 0x6000, scoped, tag = 'output window, operand 0, single buffered']
    %14 = vsyncpa [#allocation6], 0
    %15 = vsyncpa [#allocation9], 0
    %16 = vsyncpa [#allocation7], 0
    // Predicated region
    $region2: #{tpu_custom_call.1} parent=1 // pred_check
      _
    $region3: #{tpu_custom_call.1} parent=1 // pred_check_branch
      %18 = sbr.rel (0) target = $region5
    $region4: #{tpu_custom_call.1} parent=1 // pred_region
      %s20 = ssub.s32 4096, 4096
      %21 = vsyncadd [#allocation6], %s20
      %s22 = sshll.u32 [#allocation5], 4
      %s23 = int_to_ptr.vmem [resolvable:$true] %s22
      %28 = dma.hbm_to_vmem [thread:$0]  %s1, 4096, %s23, [#allocation6], 128, 128, 8
    $region5: #{tpu_custom_call.1} parent=1 // pred_fallthru
      _
    // Predicated region
    $region6: #{tpu_custom_call.1} parent=1 // pred_check
      _
    $region7: #{tpu_custom_call.1} parent=1 // pred_check_branch
      %30 = sbr.rel (0) target = $region9
    $region8: #{tpu_custom_call.1} parent=1 // pred_region
      %s32 = ssub.s32 4096, 4096
      %33 = vsyncadd [#allocation9], %s32
      %s34 = sshll.u32 [#allocation8], 4
      %s35 = int_to_ptr.vmem [resolvable:$true] %s34
      %40 = dma.hbm_to_vmem [thread:$0]  %s2, 4096, %s35, [#allocation9], 256, 256, 16
    $region9: #{tpu_custom_call.1} parent=1 // pred_fallthru
      _
    // Predicated region
    $region10: #{tpu_custom_call.1} parent=1 // pred_check
      _
    $region11: #{tpu_custom_call.1} parent=1 // pred_check_branch
      %42 = sbr.rel (0) target = $region13
    $region12: #{tpu_custom_call.1} parent=1 // pred_region
      %43 = dma.done [#allocation6], 4096
    $region13: #{tpu_custom_call.1} parent=1 // pred_fallthru
      _
    // Predicated region
    $region14: #{tpu_custom_call.1} parent=1 // pred_check
      _
    $region15: #{tpu_custom_call.1} parent=1 // pred_check_branch
      %45 = sbr.rel (0) target = $region17
    $region16: #{tpu_custom_call.1} parent=1 // pred_region
      %46 = dma.done [#allocation9], 4096
    $region17: #{tpu_custom_call.1} parent=1 // pred_fallthru
      _
    %s47 = smul.u32 0, 24
    loop: start=0, step=1, limit=24
    $region18: #{tpu_custom_call.1} parent=1 // loop_pre_header
      _
    $region19: #{tpu_custom_call.1} parent=1 // loop_header
      %s49 = sphi 0, %s53
      %p50 = scmp.ge.s32.totalorder %s49, 24
    $region20: #{tpu_custom_call.1} parent=1 // loop_header_branch
      %52 = sbr.rel (%p50) target = $region24
    $region21: #{tpu_custom_call.1} parent=1 // loop_body
      %s54 = sadd.s32 %s47, %s49
      %s55 = smul.u32 %s54, 128
      %s56 = sld [smem:[#allocation4 + %s55]]
      %s57 = scalar_lea.vmem [#allocation5], %s56
      %v58 = vld [vmem:[%s57] sm:$0x1]
      %v59 = vadd.f32 %v58, 0.0
      %s60 = sadd.s32 %s55, 1
      %s61 = sld [smem:[#allocation4 + %s60]]
      %s62 = scalar_lea.vmem [#allocation5], %s61
      %v63 = vld [vmem:[%s62] sm:$0x1]
      %v64 = vadd.f32 %v59, %v63
      %s65 = sadd.s32 %s55, 2
      %s66 = sld [smem:[#allocation4 + %s65]]
      %s67 = scalar_lea.vmem [#allocation5], %s66
      %v68 = vld [vmem:[%s67] sm:$0x1]
      %v69 = vadd.f32 %v64, %v68
      %s70 = sadd.s32 %s55, 3
      %s71 = sld [smem:[#allocation4 + %s70]]
      %s72 = scalar_lea.vmem [#allocation5], %s71
      %v73 = vld [vmem:[%s72] sm:$0x1]
      %v74 = vadd.f32 %v69, %v73
      %s75 = sadd.s32 %s55, 4
      %s76 = sld [smem:[#allocation4 + %s75]]
      %s77 = scalar_lea.vmem [#allocation5], %s76
      %v78 = vld [vmem:[%s77] sm:$0x1]
      %v79 = vadd.f32 %v74, %v78
      %s80 = sadd.s32 %s55, 5
      %s81 = sld [smem:[#allocation4 + %s80]]
      %s82 = scalar_lea.vmem [#allocation5], %s81
      %v83 = vld [vmem:[%s82] sm:$0x1]
      %v84 = vadd.f32 %v79, %v83
      %s85 = scalar_lea.vmem [#allocation2], %s49
      %86 = vst [vmem:[%s85] sm:$0x1] %v84
    $region22: #{tpu_custom_call.1} parent=1 // loop_footer
      %s53 = sadd.s32 1, %s49
    $region23: #{tpu_custom_call.1} parent=1 // loop_footer_branch
      %48 = sbr.rel target = $region19
    $region24: #{tpu_custom_call.1} parent=1 // loop_exit
      _
    %v87 = vld [vmem:[#allocation2] sm:$0xff]
    %v88 = vld [vmem:[#allocation2 + $0x8] sm:$0xff]
    %v89 = vld [vmem:[#allocation2 + $0x10] sm:$0xff]
    %v90 = vmul.f32 %v87, 0.16666667
    %v91 = vmul.f32 %v88, 0.16666667
    %v92 = vmul.f32 %v89, 0.16666667
    %v93 = vld [vmem:[#allocation8] sm:$0xff]
    %v94 = vld [vmem:[#allocation8 + $0x8] sm:$0xff]
    %v95 = vld [vmem:[#allocation8 + $0x10] sm:$0xff]
    %v96 = vld [vmem:[#allocation8 + $0x18] sm:$0xff]
    %v97 = vld [vmem:[#allocation8 + $0x20] sm:$0xff]
    %v98 = vld [vmem:[#allocation8 + $0x28] sm:$0xff]
    %v99 = vld [vmem:[#allocation8 + $0x30] sm:$0xff]
    %v100 = vld [vmem:[#allocation8 + $0x38] sm:$0xff]
    %v101 = vld [vmem:[#allocation8 + $0x40] sm:$0xff]
    %v102 = vld [vmem:[#allocation8 + $0x48] sm:$0xff]
    %v103 = vld [vmem:[#allocation8 + $0x50] sm:$0xff]
    %v104 = vld [vmem:[#allocation8 + $0x58] sm:$0xff]
    %v105 = vld [vmem:[#allocation8 + $0x60] sm:$0xff]
    %v106 = vld [vmem:[#allocation8 + $0x68] sm:$0xff]
    %v107 = vld [vmem:[#allocation8 + $0x70] sm:$0xff]
    %v108 = vld [vmem:[#allocation8 + $0x78] sm:$0xff]
    %v109 = vld [vmem:[#allocation8 + $0x80] sm:$0xff]
    %v110 = vld [vmem:[#allocation8 + $0x88] sm:$0xff]
    %v111 = vld [vmem:[#allocation8 + $0x90] sm:$0xff]
    %v112 = vld [vmem:[#allocation8 + $0x98] sm:$0xff]
    %v113 = vld [vmem:[#allocation8 + $0xa0] sm:$0xff]
    %v114 = vld [vmem:[#allocation8 + $0xa8] sm:$0xff]
    %v115 = vld [vmem:[#allocation8 + $0xb0] sm:$0xff]
    %v116 = vld [vmem:[#allocation8 + $0xb8] sm:$0xff]
    %v117 = vld [vmem:[#allocation8 + $0xc0] sm:$0xff]
    %v118 = vld [vmem:[#allocation8 + $0xc8] sm:$0xff]
    %v119 = vld [vmem:[#allocation8 + $0xd0] sm:$0xff]
    %v120 = vld [vmem:[#allocation8 + $0xd8] sm:$0xff]
    %v121 = vld [vmem:[#allocation8 + $0xe0] sm:$0xff]
    %v122 = vld [vmem:[#allocation8 + $0xe8] sm:$0xff]
    %v123 = vld [vmem:[#allocation8 + $0xf0] sm:$0xff]
    %v124 = vld [vmem:[#allocation8 + $0xf8] sm:$0xff]
    %125 = vmatprep.subr.mxu0 %v94
    %126 = vmatpush1.msra.mxu0 %v93
    %127 = vmatprep.subr.mxu0 %v96
    %128 = vmatpush1.msra.mxu0 %v95
    %129 = vmatprep.subr.mxu0 %v98
    %130 = vmatpush1.msra.mxu0 %v97
    %131 = vmatprep.subr.mxu0 %v100
    %132 = vmatpush1.msra.mxu0 %v99
    %133 = vmatprep.subr.mxu0 %v102
    %134 = vmatpush1.msra.mxu0 %v101
    %135 = vmatprep.subr.mxu0 %v104
    %136 = vmatpush1.msra.mxu0 %v103
    %137 = vmatprep.subr.mxu0 %v106
    %138 = vmatpush1.msra.mxu0 %v105
    %139 = vmatprep.subr.mxu0 %v108
    %140 = vmatpush1.msra.mxu0 %v107
    %141 = vmatprep.subr.mxu0 %v110
    %142 = vmatpush1.msra.mxu0 %v109
    %143 = vmatprep.subr.mxu0 %v112
    %144 = vmatpush1.msra.mxu0 %v111
    %145 = vmatprep.subr.mxu0 %v114
    %146 = vmatpush1.msra.mxu0 %v113
    %147 = vmatprep.subr.mxu0 %v116
    %148 = vmatpush1.msra.mxu0 %v115
    %149 = vmatprep.subr.mxu0 %v118
    %150 = vmatpush1.msra.mxu0 %v117
    %151 = vmatprep.subr.mxu0 %v120
    %152 = vmatpush1.msra.mxu0 %v119
    %153 = vmatprep.subr.mxu0 %v122
    %154 = vmatpush1.msra.mxu0 %v121
    %155 = vmatprep.subr.mxu0 %v124
    %156 = vmatpush1.msra.mxu0 %v123
    %157 = vmatprep.subr.mxu0 0.0
    %158 = vmatpush1.msra.mxu0 0.0
    %159 = vmatprep.subr.mxu0 0.0
    %160 = vmatpush1.msra.mxu0 0.0
    %161 = vmatprep.subr.mxu0 0.0
    %162 = vmatpush1.msra.mxu0 0.0
    %163 = vmatprep.subr.mxu0 0.0
    %164 = vmatpush1.msra.mxu0 0.0
    %165 = vmatprep.subr.mxu0 0.0
    %166 = vmatpush1.msra.mxu0 0.0
    %167 = vmatprep.subr.mxu0 0.0
    %168 = vmatpush1.msra.mxu0 0.0
    %169 = vmatprep.subr.mxu0 0.0
    %170 = vmatpush1.msra.mxu0 0.0
    %171 = vmatprep.subr.mxu0 0.0
    %172 = vmatpush1.msra.mxu0 0.0
    %173 = vmatprep.subr.mxu0 0.0
    %174 = vmatpush1.msra.mxu0 0.0
    %175 = vmatprep.subr.mxu0 0.0
    %176 = vmatpush1.msra.mxu0 0.0
    %177 = vmatprep.subr.mxu0 0.0
    %178 = vmatpush1.msra.mxu0 0.0
    %179 = vmatprep.subr.mxu0 0.0
    %180 = vmatpush1.msra.mxu0 0.0
    %181 = vmatprep.subr.mxu0 0.0
    %182 = vmatpush1.msra.mxu0 0.0
    %183 = vmatprep.subr.mxu0 0.0
    %184 = vmatpush1.msra.mxu0 0.0
    %185 = vmatprep.subr.mxu0 0.0
    %186 = vmatpush1.msra.mxu0 0.0
    %187 = vmatprep.subr.mxu0 0.0
    %188 = vmatpush1.msra.mxu0 0.0
    %189 = vmatprep.mubr.f32.mxu0 0.0
    %190 = vmatmul.mubr.f32.gmra.mrb[0].mxu0 %v90
    %v191 = vpop.f32.mrb[0].mxu0
    %v192 = vadd.f32 0.0, %v191
    %v193 = vpop.f32.mrb[0].mxu0
    %v194 = vadd.f32 0.0, %v193
    %195 = vmatprep.mubr.f32.mxu0 0.0
    %196 = vmatmul.mubr.f32.gmra.mrb[0].mxu0 %v91
    %v197 = vpop.f32.mrb[0].mxu0
    %v198 = vadd.f32 0.0, %v197
    %v199 = vpop.f32.mrb[0].mxu0
    %v200 = vadd.f32 0.0, %v199
    %201 = vmatprep.mubr.f32.mxu0 0.0
    %202 = vmatmul.mubr.f32.gmra.mrb[0].mxu0 %v92
    %v203 = vpop.f32.mrb[0].mxu0
    %v204 = vadd.f32 0.0, %v203
    %v205 = vpop.f32.mrb[0].mxu0
    %v206 = vadd.f32 0.0, %v205
    %207 = vdwg.mxu0
    %208 = vst [vmem:[#allocation10] sm:$0xff] %v192
    %209 = vst [vmem:[#allocation10 + $0x8] sm:$0xff] %v194
    %210 = vst [vmem:[#allocation10 + $0x10] sm:$0xff] %v198
    %211 = vst [vmem:[#allocation10 + $0x18] sm:$0xff] %v200
    %212 = vst [vmem:[#allocation10 + $0x20] sm:$0xff] %v204
    %213 = vst [vmem:[#allocation10 + $0x28] sm:$0xff] %v206
    // Predicated region
    $region25: #{tpu_custom_call.1} parent=1 // pred_check
      _
    $region26: #{tpu_custom_call.1} parent=1 // pred_check_branch
      %215 = sbr.rel (0) target = $region28
    $region27: #{tpu_custom_call.1} parent=1 // pred_region
      %s217 = ssub.s32 768, 768
      %218 = vsyncadd [#allocation7], %s217
      %s219 = sshll.u32 [#allocation10], 4
      %s220 = int_to_ptr.vmem [resolvable:$true] %s219
      %225 = dma.vmem_to_hbm [thread:$0]  %s220, 768, %s3, [#allocation7], 256, 256, 16
    $region28: #{tpu_custom_call.1} parent=1 // pred_fallthru
      _
    // Predicated region
    $region29: #{tpu_custom_call.1} parent=1 // pred_check
      _
    $region30: #{tpu_custom_call.1} parent=1 // pred_check_branch
      %227 = sbr.rel (0) target = $region32
    $region31: #{tpu_custom_call.1} parent=1 // pred_region
      %228 = dma.done [#allocation7], 768
    $region32: #{tpu_custom_call.1} parent=1 // pred_fallthru
      _
    %229 = vsyncpa [#allocation6], 1
    %230 = vsyncpa [#allocation9], 1
    %231 = vsyncpa [#allocation7], 1

</llo_original>
